<compile_context>
chip_gen: v6e
topology: v6e:2x2x1
jax: 0.10.0
libtpu: 0.0.40
codegen_flags: <defaults>
</compile_context>

<pallas_src>
import jax
import jax.numpy as jnp
from jax.experimental import pallas as pl
from jax.experimental.pallas import tpu as pltpu

EPS = 1e-5


def tts_concat_kernel(text_ref, series_ref, w1_ref, b1_ref, w2_ref, b2_ref,
                      alpha_ref, out_ref):
    # text_ref   : (tb, series_length)   batch on sublanes, features on lanes
    # series_ref : (tb, pred_len)
    # w1_ref     : (series_length, pred_len)  == fc1.weight^T
    # b1_ref     : (1, pred_len)
    # w2_ref     : (pred_len, pred_len)       == fc2.weight^T
    # b2_ref     : (1, pred_len)
    # alpha_ref  : SMEM (2,) = [sigmoid(alpha), 1 - sigmoid(alpha)]
    # out_ref    : (tb, pred_len)

    # --- series RevIN statistics (single-pass mean / E[x^2], variance clamped).
    # series_n is never materialized: norm -> fuse -> denorm folds algebraically
    # into the final store:  out = (1-a)*series + a*(h2*s_std + s_mean).
    series = series_ref[...]
    s_mean = jnp.mean(series, axis=1, keepdims=True)                  # (tb, 1)
    s_msq = jnp.mean(series * series, axis=1, keepdims=True)
    s_var = jnp.maximum(s_msq - s_mean * s_mean, 0.0)
    s_std = jnp.sqrt(s_var + EPS)

    # --- text RevIN normalize: rsqrt (EUP) + multiply instead of sqrt + divide.
    text = text_ref[...]
    t_mean = jnp.mean(text, axis=1, keepdims=True)
    t_msq = jnp.mean(text * text, axis=1, keepdims=True)
    t_var = jnp.maximum(t_msq - t_mean * t_mean, 0.0)
    inv_t_std = jax.lax.rsqrt(t_var + EPS)
    text_n = (text - t_mean) * inv_t_std                              # (tb, series_length)

    # --- two-layer MLP in natural layout (tiny matmuls; MXU is not the bottleneck).
    # pred1_dropout / pred2_dropout are identity in eval mode.
    # TODO(synk): training-mode dropout (p=0.3) not implemented (inference semantics).
    h1 = jnp.dot(text_n, w1_ref[...], preferred_element_type=jnp.float32) + b1_ref[...]
    h1 = jnp.maximum(h1, 0.0)
    h2 = jnp.dot(h1, w2_ref[...], preferred_element_type=jnp.float32) + b2_ref[...]
    h2 = jnp.maximum(h2, 0.0)

    a = alpha_ref[0]
    one_minus_a = alpha_ref[1]
    out_ref[...] = one_minus_a * series + a * (h2 * s_std + s_mean)


def _round_up(x, m):
    return ((x + m - 1) // m) * m


def tts_concat_forward(text_pred, series_pred, params, *, vmem_budget_frac=0.7):
    """text_pred: (B, series_length, 1), series_pred: (B, pred_len, 1) float32."""
    B, series_length, _ = text_pred.shape
    _, pred_len, _ = series_pred.shape

    # Natural layout — no HBM transposes, just free reshapes.
    text2d = text_pred.reshape(B, series_length).astype(jnp.float32)   # (B, L)
    series2d = series_pred.reshape(B, pred_len).astype(jnp.float32)    # (B, P)

    w1 = params["w1"].astype(jnp.float32)                              # (L, P)
    w2 = params["w2"].astype(jnp.float32)                              # (P, P)
    b1 = params["b1"].reshape(1, pred_len).astype(jnp.float32)
    b2 = params["b2"].reshape(1, pred_len).astype(jnp.float32)

    alpha = jax.nn.sigmoid(params["alpha"].astype(jnp.float32))
    alpha_scalars = jnp.stack([alpha, 1.0 - alpha]).astype(jnp.float32)

    # --- generation-aware tiling (mem-bound: tile as big as VMEM allows, but keep
    # >= 4 grid steps at large B for megacore sharding + pipelining).
    try:
        info = pltpu.get_tpu_info()
        vmem_cap = int(getattr(info, "vmem_capacity_bytes", 64 << 20))
    except Exception:  # pragma: no cover - CPU/interpret fallback
        vmem_cap = 64 << 20  # conservative (v7x per-TC)

    weight_bytes = 4 * (series_length * pred_len + pred_len * pred_len + 2 * pred_len)
    headroom = 4 << 20
    budget = max(int(vmem_cap * vmem_budget_frac) - weight_bytes - headroom, 1 << 20)
    # double-buffered text+series+out tiles plus ~1x for in-kernel temporaries
    per_row_bytes = 4 * 3 * (series_length + 2 * pred_len)
    tb_cap = max((budget // per_row_bytes) // 128 * 128, 128)

    if B <= 256:
        tb = B                                        # block == full dims (always legal)
    else:
        tb_target = _round_up(pl.cdiv(B, 4), 128)     # >= ~4 tiles for 2-TC sharding
        tb = max(128, min(tb_cap, tb_target))
    grid = (pl.cdiv(B, tb),)

    tile_bytes = 4 * tb * (series_length + 2 * pred_len)
    vmem_limit = int(min(3 * tile_bytes + weight_bytes + (8 << 20),
                         max(vmem_cap - (4 << 20), 16 << 20)))
    vmem_limit = max(vmem_limit, 16 << 20)

    out2d = pl.pallas_call(
        tts_concat_kernel,
        out_shape=jax.ShapeDtypeStruct((B, pred_len), jnp.float32),
        grid=grid,
        in_specs=[
            pl.BlockSpec((tb, series_length), lambda i: (i, 0)),        # text tile
            pl.BlockSpec((tb, pred_len), lambda i: (i, 0)),             # series tile
            pl.BlockSpec((series_length, pred_len), lambda i: (0, 0)),  # w1 resident
            pl.BlockSpec((1, pred_len), lambda i: (0, 0)),              # b1 resident
            pl.BlockSpec((pred_len, pred_len), lambda i: (0, 0)),       # w2 resident
            pl.BlockSpec((1, pred_len), lambda i: (0, 0)),              # b2 resident
            pl.BlockSpec(memory_space=pltpu.MemorySpace.SMEM),          # [a, 1-a]
        ],
        out_specs=pl.BlockSpec((tb, pred_len), lambda i: (i, 0)),
        compiler_params=pltpu.CompilerParams(
            dimension_semantics=("parallel",),
            vmem_limit_bytes=vmem_limit,
        ),
    )(text2d, series2d, w1, b1, w2, b2, alpha_scalars)

    return out2d[:, :, None], alpha                    # (B, pred_len, 1), scalar


def init_params(key, series_length, pred_len):
    k1, k2, k3, k4 = jax.random.split(key, 4)
    lim1 = 1.0 / jnp.sqrt(series_length)
    lim2 = 1.0 / jnp.sqrt(pred_len)
    return {
        # stored pre-transposed relative to nn.Linear.weight (x @ w == x @ weight.T)
        "w1": jax.random.uniform(k1, (series_length, pred_len), jnp.float32, -lim1, lim1),
        "b1": jax.random.uniform(k2, (pred_len,), jnp.float32, -lim1, lim1),
        "w2": jax.random.uniform(k3, (pred_len, pred_len), jnp.float32, -lim2, lim2),
        "b2": jax.random.uniform(k4, (pred_len,), jnp.float32, -lim2, lim2),
        "alpha": jnp.array(0.5, jnp.float32),
    }


if __name__ == "__main__":
    B = 2
    series_length = 16
    pred_len = 8

    key = jax.random.PRNGKey(0)
    kp, kt, ks = jax.random.split(key, 3)
    params = init_params(kp, series_length, pred_len)

    text_pred = jax.random.normal(kt, (B, series_length, 1), jnp.float32)
    series_pred = jax.random.normal(ks, (B, pred_len, 1), jnp.float32)

    outputs, alpha = tts_concat_forward(text_pred, series_pred, params)
    jax.block_until_ready(outputs)
    jax.block_until_ready(alpha)

    # Sanity check vs. a pure-JAX two-pass reference of the PyTorch math.
    def ref(text_pred, series_pred, p):
        s = series_pred[:, :, 0]
        sm = s.mean(1, keepdims=True)
        sd = jnp.sqrt(((s - sm) ** 2).mean(1, keepdims=True) + EPS)
        sn = (s - sm) / sd
        t = text_pred[:, :, 0]
        tm = t.mean(1, keepdims=True)
        td = jnp.sqrt(((t - tm) ** 2).mean(1, keepdims=True) + EPS)
        tn = (t - tm) / td
        h1 = jnp.maximum(tn @ p["w1"] + p["b1"], 0.0)
        h2 = jnp.maximum(h1 @ p["w2"] + p["b2"], 0.0)
        a = jax.nn.sigmoid(p["alpha"])
        o = ((1 - a) * sn + a * h2) * sd + sm
        return o[:, :, None], a

    ref_out, ref_alpha = ref(text_pred, series_pred, params)
    assert jnp.allclose(outputs, ref_out, atol=1e-4, rtol=1e-4), (
        float(jnp.max(jnp.abs(outputs - ref_out))))
    assert jnp.allclose(alpha, ref_alpha)
    print("KERNEL_OK")
</pallas_src>

<mosaic_0001>
module attributes {stable_mosaic.version = 11 : i64} {
  func.func @tts_concat_kernel(%arg0: i32, %arg1: memref<2x16xf32, #tpu.memory_space<vmem>>, %arg2: memref<2x8xf32, #tpu.memory_space<vmem>>, %arg3: memref<16x8xf32, #tpu.memory_space<vmem>>, %arg4: memref<1x8xf32, #tpu.memory_space<vmem>>, %arg5: memref<8x8xf32, #tpu.memory_space<vmem>>, %arg6: memref<1x8xf32, #tpu.memory_space<vmem>>, %arg7: memref<2xf32, #tpu.memory_space<smem>>, %arg8: memref<2x8xf32, #tpu.memory_space<vmem>>) attributes {dimension_semantics = [#tpu.dimension_semantics<parallel>], iteration_bounds = array<i64: 1>, scalar_prefetch = 0 : i64, scratch_operands = 0 : i64, tpu.core_type = #tpu.core_type<tc>, window_params = [{transform_indices = @transform_0, window_bounds = array<i64: 2, 16>}, {transform_indices = @transform_1, window_bounds = array<i64: 2, 8>}, {pipeline_mode = #tpu.pipeline_mode<synchronous>, transform_indices = @transform_2, window_bounds = array<i64: 16, 8>}, {pipeline_mode = #tpu.pipeline_mode<synchronous>, transform_indices = @transform_3, window_bounds = array<i64: 1, 8>}, {pipeline_mode = #tpu.pipeline_mode<synchronous>, transform_indices = @transform_4, window_bounds = array<i64: 8, 8>}, {pipeline_mode = #tpu.pipeline_mode<synchronous>, transform_indices = @transform_5, window_bounds = array<i64: 1, 8>}, {transform_indices = @transform_6, window_bounds = array<i64: 2>}, {transform_indices = @transform_7, window_bounds = array<i64: 2, 8>}]} {
    %c0 = arith.constant 0 : index
    %c0_0 = arith.constant 0 : index
    %0 = vector.load %arg2[%c0, %c0_0] : memref<2x8xf32, #tpu.memory_space<vmem>>, vector<2x8xf32>
    %cst = arith.constant dense<0.000000e+00> : vector<2xf32>
    %1 = vector.multi_reduction <add>, %0, %cst [1] : vector<2x8xf32> to vector<2xf32>
    %2 = vector.shape_cast %1 : vector<2xf32> to vector<2x1xf32>
    %cst_1 = arith.constant 8.000000e+00 : f32
    %3 = vector.broadcast %cst_1 : f32 to vector<2x1xf32>
    %4 = arith.divf %2, %3 : vector<2x1xf32>
    %5 = arith.mulf %0, %0 : vector<2x8xf32>
    %cst_2 = arith.constant dense<0.000000e+00> : vector<2xf32>
    %6 = vector.multi_reduction <add>, %5, %cst_2 [1] : vector<2x8xf32> to vector<2xf32>
    %7 = vector.shape_cast %6 : vector<2xf32> to vector<2x1xf32>
    %cst_3 = arith.constant 8.000000e+00 : f32
    %8 = vector.broadcast %cst_3 : f32 to vector<2x1xf32>
    %9 = arith.divf %7, %8 : vector<2x1xf32>
    %10 = arith.mulf %4, %4 : vector<2x1xf32>
    %11 = arith.subf %9, %10 : vector<2x1xf32>
    %cst_4 = arith.constant 0.000000e+00 : f32
    %12 = vector.broadcast %cst_4 : f32 to vector<2x1xf32>
    %13 = arith.maximumf %11, %12 : vector<2x1xf32>
    %cst_5 = arith.constant 9.99999974E-6 : f32
    %14 = vector.broadcast %cst_5 : f32 to vector<2x1xf32>
    %15 = arith.addf %13, %14 : vector<2x1xf32>
    %16 = math.sqrt %15 : vector<2x1xf32>
    %c0_6 = arith.constant 0 : index
    %c0_7 = arith.constant 0 : index
    %17 = vector.load %arg1[%c0_6, %c0_7] : memref<2x16xf32, #tpu.memory_space<vmem>>, vector<2x16xf32>
    %cst_8 = arith.constant dense<0.000000e+00> : vector<2xf32>
    %18 = vector.multi_reduction <add>, %17, %cst_8 [1] : vector<2x16xf32> to vector<2xf32>
    %19 = vector.shape_cast %18 : vector<2xf32> to vector<2x1xf32>
    %cst_9 = arith.constant 1.600000e+01 : f32
    %20 = vector.broadcast %cst_9 : f32 to vector<2x1xf32>
    %21 = arith.divf %19, %20 : vector<2x1xf32>
    %22 = arith.mulf %17, %17 : vector<2x16xf32>
    %cst_10 = arith.constant dense<0.000000e+00> : vector<2xf32>
    %23 = vector.multi_reduction <add>, %22, %cst_10 [1] : vector<2x16xf32> to vector<2xf32>
    %24 = vector.shape_cast %23 : vector<2xf32> to vector<2x1xf32>
    %cst_11 = arith.constant 1.600000e+01 : f32
    %25 = vector.broadcast %cst_11 : f32 to vector<2x1xf32>
    %26 = arith.divf %24, %25 : vector<2x1xf32>
    %27 = arith.mulf %21, %21 : vector<2x1xf32>
    %28 = arith.subf %26, %27 : vector<2x1xf32>
    %cst_12 = arith.constant 0.000000e+00 : f32
    %29 = vector.broadcast %cst_12 : f32 to vector<2x1xf32>
    %30 = arith.maximumf %28, %29 : vector<2x1xf32>
    %cst_13 = arith.constant 9.99999974E-6 : f32
    %31 = vector.broadcast %cst_13 : f32 to vector<2x1xf32>
    %32 = arith.addf %30, %31 : vector<2x1xf32>
    %33 = math.rsqrt %32 : vector<2x1xf32>
    %34 = vector.broadcast %21 : vector<2x1xf32> to vector<2x16xf32>
    %35 = arith.subf %17, %34 : vector<2x16xf32>
    %36 = vector.broadcast %33 : vector<2x1xf32> to vector<2x16xf32>
    %37 = arith.mulf %35, %36 : vector<2x16xf32>
    %c0_14 = arith.constant 0 : index
    %c0_15 = arith.constant 0 : index
    %38 = vector.load %arg3[%c0_14, %c0_15] : memref<16x8xf32, #tpu.memory_space<vmem>>, vector<16x8xf32>
    %cst_16 = arith.constant dense<0.000000e+00> : vector<2x8xf32>
    %39 = tpu.matmul %37, %38, %cst_16 {dimension_numbers = #tpu.dot_dimension_numbers<[1], [0], [0], [1], [0, 0, 1, 1], [], []>} : vector<2x16xf32>, vector<16x8xf32>, vector<2x8xf32> -> vector<2x8xf32>
    %c0_17 = arith.constant 0 : index
    %c0_18 = arith.constant 0 : index
    %40 = vector.load %arg4[%c0_17, %c0_18] : memref<1x8xf32, #tpu.memory_space<vmem>>, vector<1x8xf32>
    %41 = vector.broadcast %40 : vector<1x8xf32> to vector<2x8xf32>
    %42 = arith.addf %39, %41 : vector<2x8xf32>
    %cst_19 = arith.constant 0.000000e+00 : f32
    %43 = vector.broadcast %cst_19 : f32 to vector<2x8xf32>
    %44 = arith.maximumf %42, %43 : vector<2x8xf32>
    %c0_20 = arith.constant 0 : index
    %c0_21 = arith.constant 0 : index
    %45 = vector.load %arg5[%c0_20, %c0_21] : memref<8x8xf32, #tpu.memory_space<vmem>>, vector<8x8xf32>
    %cst_22 = arith.constant dense<0.000000e+00> : vector<2x8xf32>
    %46 = tpu.matmul %44, %45, %cst_22 {dimension_numbers = #tpu.dot_dimension_numbers<[1], [0], [0], [1], [0, 0, 1, 1], [], []>} : vector<2x8xf32>, vector<8x8xf32>, vector<2x8xf32> -> vector<2x8xf32>
    %c0_23 = arith.constant 0 : index
    %c0_24 = arith.constant 0 : index
    %47 = vector.load %arg6[%c0_23, %c0_24] : memref<1x8xf32, #tpu.memory_space<vmem>>, vector<1x8xf32>
    %48 = vector.broadcast %47 : vector<1x8xf32> to vector<2x8xf32>
    %49 = arith.addf %46, %48 : vector<2x8xf32>
    %cst_25 = arith.constant 0.000000e+00 : f32
    %50 = vector.broadcast %cst_25 : f32 to vector<2x8xf32>
    %51 = arith.maximumf %49, %50 : vector<2x8xf32>
    %c0_26 = arith.constant 0 : index
    %52 = memref.load %arg7[%c0_26] : memref<2xf32, #tpu.memory_space<smem>>
    %c1 = arith.constant 1 : index
    %53 = memref.load %arg7[%c1] : memref<2xf32, #tpu.memory_space<smem>>
    %54 = vector.broadcast %53 : f32 to vector<2x8xf32>
    %55 = arith.mulf %54, %0 : vector<2x8xf32>
    %56 = vector.broadcast %16 : vector<2x1xf32> to vector<2x8xf32>
    %57 = arith.mulf %51, %56 : vector<2x8xf32>
    %58 = vector.broadcast %4 : vector<2x1xf32> to vector<2x8xf32>
    %59 = arith.addf %57, %58 : vector<2x8xf32>
    %60 = vector.broadcast %52 : f32 to vector<2x8xf32>
    %61 = arith.mulf %60, %59 : vector<2x8xf32>
    %62 = arith.addf %55, %61 : vector<2x8xf32>
    %c0_27 = arith.constant 0 : index
    %c0_28 = arith.constant 0 : index
    %63 = vector.load %arg8[%c0_27, %c0_28] : memref<2x8xf32, #tpu.memory_space<vmem>>, vector<2x8xf32>
    tpu.vector_store %arg8[%c0_27, %c0_28], %62 {strides = array<i32>} : memref<2x8xf32, #tpu.memory_space<vmem>>, vector<2x8xf32>,
    return
  }
  func.func @transform_0(%arg0: i32) -> (i32, i32) {
    %c0_i32 = arith.constant 0 : i32
    %c0_i32_0 = arith.constant 0 : i32
    return %arg0, %c0_i32 : i32, i32
  }
  func.func @transform_1(%arg0: i32) -> (i32, i32) {
    %c0_i32 = arith.constant 0 : i32
    %c0_i32_0 = arith.constant 0 : i32
    return %arg0, %c0_i32 : i32, i32
  }
  func.func @transform_2(%arg0: i32) -> (i32, i32) {
    %c0_i32 = arith.constant 0 : i32
    %c0_i32_0 = arith.constant 0 : i32
    %c0_i32_1 = arith.constant 0 : i32
    return %c0_i32, %c0_i32_0 : i32, i32
  }
  func.func @transform_3(%arg0: i32) -> (i32, i32) {
    %c0_i32 = arith.constant 0 : i32
    %c0_i32_0 = arith.constant 0 : i32
    %c0_i32_1 = arith.constant 0 : i32
    return %c0_i32, %c0_i32_0 : i32, i32
  }
  func.func @transform_4(%arg0: i32) -> (i32, i32) {
    %c0_i32 = arith.constant 0 : i32
    %c0_i32_0 = arith.constant 0 : i32
    %c0_i32_1 = arith.constant 0 : i32
    return %c0_i32, %c0_i32_0 : i32, i32
  }
  func.func @transform_5(%arg0: i32) -> (i32, i32) {
    %c0_i32 = arith.constant 0 : i32
    %c0_i32_0 = arith.constant 0 : i32
    %c0_i32_1 = arith.constant 0 : i32
    return %c0_i32, %c0_i32_0 : i32, i32
  }
  func.func @transform_6(%arg0: i32) -> i32 {
    %c0_i32 = arith.constant 0 : i32
    %c0_i32_0 = arith.constant 0 : i32
    return %c0_i32 : i32
  }
  func.func @transform_7(%arg0: i32) -> (i32, i32) {
    %c0_i32 = arith.constant 0 : i32
    %c0_i32_0 = arith.constant 0 : i32
    return %arg0, %c0_i32 : i32, i32
  }
}

</mosaic_0001>

<llo_original>
// kernel: tpu_custom_call.1
$region0: #{tpu_custom_call.1}
  #allocation0 [shape = 'u32[]', space=smem, size = 0x4, offset = 0x4, fixed_abs, tag = 'smem constant byte address 0x4 - core index']
  #allocation1 [shape = 'u32[144,128]{1,0:T(1,128)}', space=vmem, size = 0x12000, scoped, tag = 'internal scratch']
  %s0 = inlined_call_operand.vmem [shape: f32[2,16], index: 0, kind: input, shape index: {}]
  %s1 = inlined_call_operand.vmem [shape: f32[2,8], index: 1, kind: input, shape index: {}]
  %s2 = inlined_call_operand.vmem [shape: f32[16,8], index: 2, kind: input, shape index: {}]
  %s3 = inlined_call_operand.vmem [shape: f32[1,8], index: 3, kind: input, shape index: {}]
  %s4 = inlined_call_operand.vmem [shape: f32[8,8], index: 4, kind: input, shape index: {}]
  %s5 = inlined_call_operand.vmem [shape: f32[1,8], index: 5, kind: input, shape index: {}]
  %s6 = inlined_call_operand.vmem [shape: f32[2], index: 6, kind: input, shape index: {}]
  %s7 = inlined_call_operand.hbm [shape: f32[2,8], index: 7, kind: output, shape index: {}]
  %s8 = sld [smem:[#allocation0]]
  $region42: #{tpu_custom_call.1} parent=0
    _
  %s10 = ssub.s32 1, %s8
  %s11 = scalar_select 0, %s10, %s8
  $region1: #{tpu_custom_call.1} parent=0
    #allocation2 [shape = 'u8[512]{0}', space=smem, size = 0x200, scoped, tag = 'input window, operand 6, single buffered']
    #allocation3 [shape = 's32[1]{0}', space=sflag, size = 0x4, scoped, tag = 'scoped memory for tpu_custom_call.1']
    #allocation4 [shape = 's32[1]{0}', space=sflag, size = 0x4, scoped, tag = 'scoped memory for tpu_custom_call.1']
    #allocation5 [shape = 'u8[1024]{0}', space=vmem, size = 0x400, scoped, tag = 'output window, operand 0, single buffered']
    %12 = vsyncpa [#allocation4], 0
    %13 = vsyncpa [#allocation3], 0
    // Predicated region
    $region2: #{tpu_custom_call.1} parent=1 // pred_check
      _
    $region3: #{tpu_custom_call.1} parent=1 // pred_check_branch
      %15 = sbr.rel (0) target = $region5
    $region4: #{tpu_custom_call.1} parent=1 // pred_region
      _
    $region5: #{tpu_custom_call.1} parent=1 // pred_fallthru
      _
    // Predicated region
    $region6: #{tpu_custom_call.1} parent=1 // pred_check
      _
    $region7: #{tpu_custom_call.1} parent=1 // pred_check_branch
      %17 = sbr.rel (0) target = $region9
    $region8: #{tpu_custom_call.1} parent=1 // pred_region
      _
    $region9: #{tpu_custom_call.1} parent=1 // pred_fallthru
      _
    // Predicated region
    $region10: #{tpu_custom_call.1} parent=1 // pred_check
      _
    $region11: #{tpu_custom_call.1} parent=1 // pred_check_branch
      %19 = sbr.rel (0) target = $region13
    $region12: #{tpu_custom_call.1} parent=1 // pred_region
      _
    $region13: #{tpu_custom_call.1} parent=1 // pred_fallthru
      _
    // Predicated region
    $region14: #{tpu_custom_call.1} parent=1 // pred_check
      _
    $region15: #{tpu_custom_call.1} parent=1 // pred_check_branch
      %21 = sbr.rel (0) target = $region17
    $region16: #{tpu_custom_call.1} parent=1 // pred_region
      _
    $region17: #{tpu_custom_call.1} parent=1 // pred_fallthru
      _
    // Predicated region
    $region18: #{tpu_custom_call.1} parent=1 // pred_check
      _
    $region19: #{tpu_custom_call.1} parent=1 // pred_check_branch
      %23 = sbr.rel (0) target = $region21
    $region20: #{tpu_custom_call.1} parent=1 // pred_region
      _
    $region21: #{tpu_custom_call.1} parent=1 // pred_fallthru
      _
    // Predicated region
    $region22: #{tpu_custom_call.1} parent=1 // pred_check
      _
    $region23: #{tpu_custom_call.1} parent=1 // pred_check_branch
      %25 = sbr.rel (0) target = $region25
    $region24: #{tpu_custom_call.1} parent=1 // pred_region
      _
    $region25: #{tpu_custom_call.1} parent=1 // pred_fallthru
      _
    // Predicated region
    $region26: #{tpu_custom_call.1} parent=1 // pred_check
      _
    $region27: #{tpu_custom_call.1} parent=1 // pred_check_branch
      %27 = sbr.rel (0) target = $region29
    $region28: #{tpu_custom_call.1} parent=1 // pred_region
      %s29 = ssub.s32 16, 16
      %30 = vsyncadd [#allocation4], %s29
      %s32 = sshll.u32 %s6, 4
      %s33 = int_to_ptr.vmem [resolvable:$true] %s32
      %35 = dma.vmem_to_smem %s33, 16, [#allocation2], [#allocation4]
    $region29: #{tpu_custom_call.1} parent=1 // pred_fallthru
      _
    // Predicated region
    $region30: #{tpu_custom_call.1} parent=1 // pred_check
      _
    $region31: #{tpu_custom_call.1} parent=1 // pred_check_branch
      %37 = sbr.rel (0) target = $region33
    $region32: #{tpu_custom_call.1} parent=1 // pred_region
      %38 = dma.done [#allocation4], 16
    $region33: #{tpu_custom_call.1} parent=1 // pred_fallthru
      _
    %39 = sfence
    %v40 = vld [vmem:[%s1] sm:$0x3]
    %vm41 = vcmask 58368
    %v42 = vsel %vm41, %v40, 0.0
    %43 = vadd.xlane.f32.xlu0 %v42
    %v44 = vpop.xlane.xlu0 %43
    %v45 = vrcp.pop 8.0
    %v46 = vmul.f32 %v44, %v45
    %v47 = vmul.f32 %v40, %v40
    %v48 = vsel %vm41, %v47, 0.0
    %49 = vadd.xlane.f32.xlu0 %v48
    %v50 = vpop.xlane.xlu0 %49
    %v51 = vmul.f32 %v50, %v45
    %v52 = vmul.f32 %v46, %v46
    %v53 = vsub.f32 %v51, %v52
    %v54 = vmax.f32 %v53, 0.0
    %v55 = vadd.f32 %v54, 1e-05
    %v56 = vrsqrt.pop %v55
    %v57 = vmul.f32 %v55, %v56
    %vm58 = vcmp.eq.f32.partialorder %v55, inf
    %v59 = vsel %vm58, %v55, %v57
    %vm60 = vcmp.eq.f32.partialorder %v55, 0.0
    %v61 = vand.u32 %v55, 2147483648
    %v62 = vsel %vm60, %v61, %v59
    %v63 = vld [vmem:[%s0] sm:$0x3]
    %vm64 = vcmask 123904
    %v65 = vsel %vm64, %v63, 0.0
    %66 = vadd.xlane.f32.xlu0 %v65
    %v67 = vpop.xlane.xlu0 %66
    %v68 = vrcp.pop 16.0
    %v69 = vmul.f32 %v67, %v68
    %v70 = vmul.f32 %v63, %v63
    %v71 = vsel %vm64, %v70, 0.0
    %72 = vadd.xlane.f32.xlu0 %v71
    %v73 = vpop.xlane.xlu0 %72
    %v74 = vmul.f32 %v73, %v68
    %v75 = vmul.f32 %v69, %v69
    %v76 = vsub.f32 %v74, %v75
    %v77 = vmax.f32 %v76, 0.0
    %v78 = vadd.f32 %v77, 1e-05
    %v79 = vrsqrt.pop %v78
    %v80 = vsub.f32 %v63, %v69
    %v81 = vmul.f32 %v80, %v79
    %v82 = vld [vmem:[%s2] sm:$0xff]
    %v83 = vld [vmem:[%s2 + $0x8] sm:$0xff]
    %v84 = vld [vmem:[%s3] sm:$0x1]
    %v86 = vlaneseq
    %v87 = vshrl.u32 %v86, 7
    %v88 = vsub.s32 0, %v87
    %v89 = vrot.slane %v84, %v88
    %vm91 = vcmask 130048
    %v93 = vsel %vm91, %v81, 0
    %95 = vmatprep.subr.mxu0 0.0
    %96 = vmatpush1.msra.mxu0 0.0
    %97 = vmatprep.subr.mxu0 0.0
    %98 = vmatpush1.msra.mxu0 0.0
    %99 = vmatprep.subr.mxu0 0.0
    %100 = vmatpush1.msra.mxu0 0.0
    %101 = vmatprep.subr.mxu0 0.0
    %102 = vmatpush1.msra.mxu0 0.0
    %103 = vmatprep.subr.mxu0 0.0
    %104 = vmatpush1.msra.mxu0 0.0
    %105 = vmatprep.subr.mxu0 0.0
    %106 = vmatpush1.msra.mxu0 0.0
    %107 = vmatprep.subr.mxu0 0.0
    %108 = vmatpush1.msra.mxu0 0.0
    %109 = vmatprep.subr.mxu0 0.0
    %110 = vmatpush1.msra.mxu0 0.0
    %111 = vmatprep.subr.mxu0 0.0
    %112 = vmatpush1.msra.mxu0 0.0
    %113 = vmatprep.subr.mxu0 0.0
    %114 = vmatpush1.msra.mxu0 0.0
    %115 = vmatprep.subr.mxu0 0.0
    %116 = vmatpush1.msra.mxu0 0.0
    %117 = vmatprep.subr.mxu0 0.0
    %118 = vmatpush1.msra.mxu0 0.0
    %119 = vmatprep.subr.mxu0 0.0
    %120 = vmatpush1.msra.mxu0 0.0
    %121 = vmatprep.subr.mxu0 0.0
    %122 = vmatpush1.msra.mxu0 0.0
    %123 = vmatprep.subr.mxu0 0.0
    %124 = vmatpush1.msra.mxu0 %v83
    %125 = vmatprep.subr.mxu0 0.0
    %126 = vmatpush1.msra.mxu0 %v82
    %127 = vmatprep.subr.mxu0 0.0
    %128 = vmatpush2.msra.mxu0 0.0
    %129 = vmatprep.subr.mxu0 0.0
    %130 = vmatpush2.msra.mxu0 0.0
    %131 = vmatprep.subr.mxu0 0.0
    %132 = vmatpush2.msra.mxu0 0.0
    %133 = vmatprep.subr.mxu0 0.0
    %134 = vmatpush2.msra.mxu0 0.0
    %135 = vmatprep.subr.mxu0 0.0
    %136 = vmatpush2.msra.mxu0 0.0
    %137 = vmatprep.subr.mxu0 0.0
    %138 = vmatpush2.msra.mxu0 0.0
    %139 = vmatprep.subr.mxu0 0.0
    %140 = vmatpush2.msra.mxu0 0.0
    %141 = vmatprep.subr.mxu0 0.0
    %142 = vmatpush2.msra.mxu0 0.0
    %143 = vmatprep.subr.mxu0 0.0
    %144 = vmatpush2.msra.mxu0 0.0
    %145 = vmatprep.subr.mxu0 0.0
    %146 = vmatpush2.msra.mxu0 0.0
    %147 = vmatprep.subr.mxu0 0.0
    %148 = vmatpush2.msra.mxu0 0.0
    %149 = vmatprep.subr.mxu0 0.0
    %150 = vmatpush2.msra.mxu0 0.0
    %151 = vmatprep.subr.mxu0 0.0
    %152 = vmatpush2.msra.mxu0 0.0
    %153 = vmatprep.subr.mxu0 0.0
    %154 = vmatpush2.msra.mxu0 0.0
    %155 = vmatprep.subr.mxu0 0.0
    %156 = vmatpush2.msra.mxu0 0.0
    %157 = vmatprep.subr.mxu0 0.0
    %158 = vmatpush2.msra.mxu0 0.0
    %159 = vmatprep.mubr.f32.mxu0 0.0
    %160 = vmatmul.mubr.f32.gmra.mxu0 %v93
    %v161 = vpop.f32.mrf.mxu0
    %v162 = vadd.f32 %v89, %v161
    %v163 = vpop.f32.mrf.mxu0
    %164 = vdwg.mxu0
    %v165 = vmax.f32 %v162, 0.0
    %v166 = vld [vmem:[%s4] sm:$0xff]
    %v167 = vld [vmem:[%s5] sm:$0x1]
    %v169 = vlaneseq
    %v170 = vshrl.u32 %v169, 7
    %v171 = vsub.s32 0, %v170
    %v172 = vrot.slane %v167, %v171
    %vm174 = vcmask 64512
    %v176 = vsel %vm174, %v165, 0
    %178 = vmatprep.subr.mxu0 0.0
    %179 = vmatpush1.msra.mxu0 0.0
    %180 = vmatprep.subr.mxu0 0.0
    %181 = vmatpush1.msra.mxu0 0.0
    %182 = vmatprep.subr.mxu0 0.0
    %183 = vmatpush1.msra.mxu0 0.0
    %184 = vmatprep.subr.mxu0 0.0
    %185 = vmatpush1.msra.mxu0 0.0
    %186 = vmatprep.subr.mxu0 0.0
    %187 = vmatpush1.msra.mxu0 0.0
    %188 = vmatprep.subr.mxu0 0.0
    %189 = vmatpush1.msra.mxu0 0.0
    %190 = vmatprep.subr.mxu0 0.0
    %191 = vmatpush1.msra.mxu0 0.0
    %192 = vmatprep.subr.mxu0 0.0
    %193 = vmatpush1.msra.mxu0 0.0
    %194 = vmatprep.subr.mxu0 0.0
    %195 = vmatpush1.msra.mxu0 0.0
    %196 = vmatprep.subr.mxu0 0.0
    %197 = vmatpush1.msra.mxu0 0.0
    %198 = vmatprep.subr.mxu0 0.0
    %199 = vmatpush1.msra.mxu0 0.0
    %200 = vmatprep.subr.mxu0 0.0
    %201 = vmatpush1.msra.mxu0 0.0
    %202 = vmatprep.subr.mxu0 0.0
    %203 = vmatpush1.msra.mxu0 0.0
    %204 = vmatprep.subr.mxu0 0.0
    %205 = vmatpush1.msra.mxu0 0.0
    %206 = vmatprep.subr.mxu0 0.0
    %207 = vmatpush1.msra.mxu0 0.0
    %208 = vmatprep.subr.mxu0 0.0
    %209 = vmatpush1.msra.mxu0 %v166
    %210 = vmatprep.subr.mxu0 0.0
    %211 = vmatpush2.msra.mxu0 0.0
    %212 = vmatprep.subr.mxu0 0.0
    %213 = vmatpush2.msra.mxu0 0.0
    %214 = vmatprep.subr.mxu0 0.0
    %215 = vmatpush2.msra.mxu0 0.0
    %216 = vmatprep.subr.mxu0 0.0
    %217 = vmatpush2.msra.mxu0 0.0
    %218 = vmatprep.subr.mxu0 0.0
    %219 = vmatpush2.msra.mxu0 0.0
    %220 = vmatprep.subr.mxu0 0.0
    %221 = vmatpush2.msra.mxu0 0.0
    %222 = vmatprep.subr.mxu0 0.0
    %223 = vmatpush2.msra.mxu0 0.0
    %224 = vmatprep.subr.mxu0 0.0
    %225 = vmatpush2.msra.mxu0 0.0
    %226 = vmatprep.subr.mxu0 0.0
    %227 = vmatpush2.msra.mxu0 0.0
    %228 = vmatprep.subr.mxu0 0.0
    %229 = vmatpush2.msra.mxu0 0.0
    %230 = vmatprep.subr.mxu0 0.0
    %231 = vmatpush2.msra.mxu0 0.0
    %232 = vmatprep.subr.mxu0 0.0
    %233 = vmatpush2.msra.mxu0 0.0
    %234 = vmatprep.subr.mxu0 0.0
    %235 = vmatpush2.msra.mxu0 0.0
    %236 = vmatprep.subr.mxu0 0.0
    %237 = vmatpush2.msra.mxu0 0.0
    %238 = vmatprep.subr.mxu0 0.0
    %239 = vmatpush2.msra.mxu0 0.0
    %240 = vmatprep.subr.mxu0 0.0
    %241 = vmatpush2.msra.mxu0 0.0
    %242 = vmatprep.mubr.f32.mxu0 0.0
    %243 = vmatmul.mubr.f32.gmra.mxu0 %v176
    %v244 = vpop.f32.mrf.mxu0
    %v245 = vadd.f32 %v172, %v244
    %v246 = vpop.f32.mrf.mxu0
    %247 = vdwg.mxu0
    %v248 = vmax.f32 %v245, 0.0
    %s249 = sld [smem:[#allocation2]]
    %s250 = sld [smem:[#allocation2 + $0x1]]
    %v251 = vstv %s250
    %v252 = vmul.f32 %v251, %v40
    %v253 = vmul.f32 %v248, %v62
    %v254 = vadd.f32 %v253, %v46
    %v255 = vstv %s249
    %v256 = vmul.f32 %v255, %v254
    %v257 = vadd.f32 %v252, %v256
    %258 = vst.msk [vmem:[#allocation5] sm:$0x3] %vm41, %v257
    // Predicated region
    $region34: #{tpu_custom_call.1} parent=1 // pred_check
      _
    $region35: #{tpu_custom_call.1} parent=1 // pred_check_branch
      %260 = sbr.rel (0) target = $region37
    $region36: #{tpu_custom_call.1} parent=1 // pred_region
      %s262 = ssub.s32 32, 32
      %263 = vsyncadd [#allocation3], %s262
      %s265 = sshll.u32 [#allocation5], 4
      %s266 = int_to_ptr.vmem [resolvable:$true] %s265
      %268 = dma.vmem_to_hbm [thread:$0]  %s266, 32, %s7, [#allocation3]
    $region37: #{tpu_custom_call.1} parent=1 // pred_fallthru
      _
    // Predicated region
    $region38: #{tpu_custom_call.1} parent=1 // pred_check
      _
    $region39: #{tpu_custom_call.1} parent=1 // pred_check_branch
      %270 = sbr.rel (0) target = $region41
    $region40: #{tpu_custom_call.1} parent=1 // pred_region
      %271 = dma.done [#allocation3], 32
    $region41: #{tpu_custom_call.1} parent=1 // pred_fallthru
      _
    %272 = vsyncpa [#allocation3], 1
    %273 = vsyncpa [#allocation4], 1

</llo_original>
